<compile_context>
chip_gen: v5e
topology: v5e:2x2
jax: 0.10.0
libtpu: 0.0.40
codegen_flags: <defaults>
</compile_context>

<pallas_src>
import jax
import jax.numpy as jnp
from jax.experimental import pallas as pl
from jax.experimental.pallas import tpu as pltpu


def _round_up(x, m):
    return ((x + m - 1) // m) * m


def _device_kind():
    try:
        return jax.devices()[0].device_kind.lower()
    except Exception:
        return ""


def _tensorcores_per_chip():
    # v7x has 2 TensorCores per chip; v5e / v6e have 1.
    return 2 if "v7" in _device_kind() else 1


def _default_compute_dtype():
    kind = _device_kind()
    # v6e / v7x MXUs are natively bf16 and their VPUs support bf16; v5e's VPU
    # does not, so keep f32 operands there (accumulation is f32 everywhere).
    if "v6" in kind or "v7" in kind:
        return jnp.bfloat16
    return jnp.float32


def dqn_kernel(x_ref,
               w1_ref, b1_ref,
               w2_ref, b2_ref,
               w3_ref, b3_ref,
               w4_ref, b4_ref,
               o_ref):
    cdt = w1_ref.dtype  # MXU operand dtype (bf16 on v6e/v7x, f32 on v5e)
    # Layer 1: Linear + ReLU   (f32 accumulation throughout)
    h = jnp.dot(x_ref[...], w1_ref[...], preferred_element_type=jnp.float32) + b1_ref[...]
    h = jnp.maximum(h, 0.0)
    # Layer 2: Linear + ReLU
    h = jnp.dot(h.astype(cdt), w2_ref[...], preferred_element_type=jnp.float32) + b2_ref[...]
    h = jnp.maximum(h, 0.0)
    # Layer 3: Linear + ReLU
    h = jnp.dot(h.astype(cdt), w3_ref[...], preferred_element_type=jnp.float32) + b3_ref[...]
    h = jnp.maximum(h, 0.0)
    # Layer 4: Linear (no activation -- Q-values)
    q = jnp.dot(h.astype(cdt), w4_ref[...], preferred_element_type=jnp.float32) + b4_ref[...]
    o_ref[...] = q.astype(o_ref.dtype)


def init_params(key, input_dim, hidden_dim, output_dim):
    """PyTorch-style Linear init. Weights stored as [in, out] (transposed layout)."""
    dims = [(input_dim, hidden_dim),
            (hidden_dim, hidden_dim),
            (hidden_dim, hidden_dim),
            (hidden_dim, output_dim)]
    params = {}
    for i, (din, dout) in enumerate(dims, start=1):
        key, kw, kb = jax.random.split(key, 3)
        bound = 1.0 / (din ** 0.5)
        params[f"w{i}"] = jax.random.uniform(kw, (din, dout), jnp.float32, -bound, bound)
        params[f"b{i}"] = jax.random.uniform(kb, (1, dout), jnp.float32, -bound, bound)
    return params


def pad_params(params, compute_dtype=jnp.float32):
    """Zero-pad ONLY the hidden dim (done once, outside the kernel) and cast the
    weight matrices to the MXU compute dtype.  Biases stay f32 (added to the
    f32 accumulator).  Input and output feature dims are left unpadded."""
    in_dim, hid_dim = params["w1"].shape
    out_dim = params["w4"].shape[1]
    kind = _device_kind()
    # v6e / v7x MXUs are 256x256; use 256 granularity once the hidden dim is
    # big enough to matter, otherwise (and always on v5e) keep 128.
    granule = 256 if (hid_dim >= 256 and ("v6" in kind or "v7" in kind)) else 128
    HID_P = _round_up(hid_dim, granule)

    def padw(a, rows, cols):
        return jnp.pad(a, ((0, rows - a.shape[0]),
                           (0, cols - a.shape[1]))).astype(compute_dtype)

    def padb(a, cols):
        return jnp.pad(a, ((0, 0), (0, cols - a.shape[1]))).astype(jnp.float32)

    return {
        "w1": padw(params["w1"], in_dim, HID_P), "b1": padb(params["b1"], HID_P),
        "w2": padw(params["w2"], HID_P, HID_P),  "b2": padb(params["b2"], HID_P),
        "w3": padw(params["w3"], HID_P, HID_P),  "b3": padb(params["b3"], HID_P),
        "w4": padw(params["w4"], HID_P, out_dim), "b4": padb(params["b4"], out_dim),
    }


def dqn_forward(x, padded_params):
    """x: [B, input_dim] float32.  padded_params: output of pad_params()."""
    B, in_dim = x.shape
    HID_P = padded_params["w2"].shape[0]
    out_dim = padded_params["w4"].shape[1]
    compute_dtype = padded_params["w1"].dtype

    # --- batch tiling policy -------------------------------------------------
    num_cores = _tensorcores_per_chip()
    B8 = _round_up(B, 8)
    cap = 512 if num_cores > 1 else 1024      # fewer, bigger tiles on single-TC chips
    min_tiles = num_cores if B8 >= 8 * num_cores else 1   # >=2 steps on v7x
    num_tiles = max(min_tiles, pl.cdiv(B8, cap))
    TB = _round_up(pl.cdiv(B8, num_tiles), 8)  # balanced tiles, <8 padded rows each
    num_tiles = pl.cdiv(B8, TB)
    B_pad = TB * num_tiles
    grid = (num_tiles,)

    # Only batch-dim padding; feature dim streams at its native width.
    x_p = jnp.pad(x, ((0, B_pad - B), (0, 0))).astype(compute_dtype)

    w_args = (padded_params["w1"], padded_params["b1"],
              padded_params["w2"], padded_params["b2"],
              padded_params["w3"], padded_params["b3"],
              padded_params["w4"], padded_params["b4"])

    # x / out are tiled over the batch; weights & biases use constant
    # index_maps with full-array blocks so they are fetched once and stay
    # VMEM-resident across all grid steps.
    in_specs = [pl.BlockSpec((TB, in_dim), lambda i: (i, 0))]
    for w in w_args:
        in_specs.append(pl.BlockSpec(w.shape, lambda i: (0, 0)))
    out_spec = pl.BlockSpec((TB, out_dim), lambda i: (i, 0))

    itemsize = jnp.dtype(compute_dtype).itemsize
    flops = 2 * B_pad * (in_dim * HID_P + 2 * HID_P * HID_P + HID_P * out_dim)
    bytes_accessed = (x_p.size * itemsize
                      + sum(int(w.size) * w.dtype.itemsize for w in w_args)
                      + B_pad * out_dim * 4)
    cost = pl.CostEstimate(flops=flops, transcendentals=0,
                           bytes_accessed=int(bytes_accessed))

    # TODO(synk): if the net is scaled up (hidden >= ~1024 f32), set
    # pltpu.CompilerParams(vmem_limit_bytes=...) explicitly and shrink TB so
    # resident weights + double-buffered x/out tiles fit v7x's 64 MiB VMEM.
    out = pl.pallas_call(
        dqn_kernel,
        out_shape=jax.ShapeDtypeStruct((B_pad, out_dim), jnp.float32),
        grid=grid,
        in_specs=in_specs,
        out_specs=out_spec,
        compiler_params=pltpu.CompilerParams(
            dimension_semantics=("parallel",)),
        cost_estimate=cost,
    )(x_p, *w_args)

    # Only the padded batch rows need slicing off; the lane dim is exact.
    return out[:B]


def dqn_reference(x, params):
    """Plain-JAX (f32) reference of the same forward pass (unpadded params)."""
    h = jnp.maximum(x @ params["w1"] + params["b1"], 0.0)
    h = jnp.maximum(h @ params["w2"] + params["b2"], 0.0)
    h = jnp.maximum(h @ params["w3"] + params["b3"], 0.0)
    return h @ params["w4"] + params["b4"]


if __name__ == "__main__":
    input_dim, hidden_dim, output_dim = 16, 32, 4
    batch = 40  # exercises the balanced batch-tiling path (and 2-step grid on v7x)

    key = jax.random.PRNGKey(0)
    key, kx = jax.random.split(key)
    x = jax.random.normal(kx, (batch, input_dim), jnp.float32)
    params = init_params(key, input_dim, hidden_dim, output_dim)

    compute_dtype = _default_compute_dtype()
    padded_params = pad_params(params, compute_dtype)

    q_pallas = jax.block_until_ready(dqn_forward(x, padded_params))
    q_ref = dqn_reference(x, params)

    assert q_pallas.shape == (batch, output_dim)
    if compute_dtype == jnp.bfloat16:
        tol = dict(atol=5e-2, rtol=5e-2)   # bf16 MXU operands, f32 accumulation
    else:
        tol = dict(atol=1e-5, rtol=1e-5)
    assert jnp.allclose(q_pallas, q_ref, **tol), "Pallas output mismatch vs reference"
    print("KERNEL_OK")
</pallas_src>

<mosaic_0001>
module attributes {stable_mosaic.version = 11 : i64} {
  func.func @dqn_kernel(%arg0: i32, %arg1: memref<40x16xf32, #tpu.memory_space<vmem>>, %arg2: memref<16x128xf32, #tpu.memory_space<vmem>>, %arg3: memref<1x128xf32, #tpu.memory_space<vmem>>, %arg4: memref<128x128xf32, #tpu.memory_space<vmem>>, %arg5: memref<1x128xf32, #tpu.memory_space<vmem>>, %arg6: memref<128x128xf32, #tpu.memory_space<vmem>>, %arg7: memref<1x128xf32, #tpu.memory_space<vmem>>, %arg8: memref<128x4xf32, #tpu.memory_space<vmem>>, %arg9: memref<1x4xf32, #tpu.memory_space<vmem>>, %arg10: memref<40x4xf32, #tpu.memory_space<vmem>>) attributes {dimension_semantics = [#tpu.dimension_semantics<parallel>], iteration_bounds = array<i64: 1>, scalar_prefetch = 0 : i64, scratch_operands = 0 : i64, tpu.core_type = #tpu.core_type<tc>, window_params = [{transform_indices = @transform_0, window_bounds = array<i64: 40, 16>}, {pipeline_mode = #tpu.pipeline_mode<synchronous>, transform_indices = @transform_1, window_bounds = array<i64: 16, 128>}, {pipeline_mode = #tpu.pipeline_mode<synchronous>, transform_indices = @transform_2, window_bounds = array<i64: 1, 128>}, {pipeline_mode = #tpu.pipeline_mode<synchronous>, transform_indices = @transform_3, window_bounds = array<i64: 128, 128>}, {pipeline_mode = #tpu.pipeline_mode<synchronous>, transform_indices = @transform_4, window_bounds = array<i64: 1, 128>}, {pipeline_mode = #tpu.pipeline_mode<synchronous>, transform_indices = @transform_5, window_bounds = array<i64: 128, 128>}, {pipeline_mode = #tpu.pipeline_mode<synchronous>, transform_indices = @transform_6, window_bounds = array<i64: 1, 128>}, {pipeline_mode = #tpu.pipeline_mode<synchronous>, transform_indices = @transform_7, window_bounds = array<i64: 128, 4>}, {pipeline_mode = #tpu.pipeline_mode<synchronous>, transform_indices = @transform_8, window_bounds = array<i64: 1, 4>}, {transform_indices = @transform_9, window_bounds = array<i64: 40, 4>}]} {
    %c0 = arith.constant 0 : index
    %c0_0 = arith.constant 0 : index
    %0 = vector.load %arg1[%c0, %c0_0] : memref<40x16xf32, #tpu.memory_space<vmem>>, vector<40x16xf32>
    %c0_1 = arith.constant 0 : index
    %c0_2 = arith.constant 0 : index
    %1 = vector.load %arg2[%c0_1, %c0_2] : memref<16x128xf32, #tpu.memory_space<vmem>>, vector<16x128xf32>
    %cst = arith.constant dense<0.000000e+00> : vector<40x128xf32>
    %2 = tpu.matmul %0, %1, %cst {dimension_numbers = #tpu.dot_dimension_numbers<[1], [0], [0], [1], [0, 0, 1, 1], [], []>} : vector<40x16xf32>, vector<16x128xf32>, vector<40x128xf32> -> vector<40x128xf32>
    %c0_3 = arith.constant 0 : index
    %c0_4 = arith.constant 0 : index
    %3 = vector.load %arg3[%c0_3, %c0_4] : memref<1x128xf32, #tpu.memory_space<vmem>>, vector<1x128xf32>
    %4 = vector.broadcast %3 : vector<1x128xf32> to vector<40x128xf32>
    %5 = arith.addf %2, %4 : vector<40x128xf32>
    %cst_5 = arith.constant 0.000000e+00 : f32
    %6 = vector.broadcast %cst_5 : f32 to vector<40x128xf32>
    %7 = arith.maximumf %5, %6 : vector<40x128xf32>
    %c0_6 = arith.constant 0 : index
    %c0_7 = arith.constant 0 : index
    %8 = vector.load %arg4[%c0_6, %c0_7] : memref<128x128xf32, #tpu.memory_space<vmem>>, vector<128x128xf32>
    %cst_8 = arith.constant dense<0.000000e+00> : vector<40x128xf32>
    %9 = tpu.matmul %7, %8, %cst_8 {dimension_numbers = #tpu.dot_dimension_numbers<[1], [0], [0], [1], [0, 0, 1, 1], [], []>} : vector<40x128xf32>, vector<128x128xf32>, vector<40x128xf32> -> vector<40x128xf32>
    %c0_9 = arith.constant 0 : index
    %c0_10 = arith.constant 0 : index
    %10 = vector.load %arg5[%c0_9, %c0_10] : memref<1x128xf32, #tpu.memory_space<vmem>>, vector<1x128xf32>
    %11 = vector.broadcast %10 : vector<1x128xf32> to vector<40x128xf32>
    %12 = arith.addf %9, %11 : vector<40x128xf32>
    %cst_11 = arith.constant 0.000000e+00 : f32
    %13 = vector.broadcast %cst_11 : f32 to vector<40x128xf32>
    %14 = arith.maximumf %12, %13 : vector<40x128xf32>
    %c0_12 = arith.constant 0 : index
    %c0_13 = arith.constant 0 : index
    %15 = vector.load %arg6[%c0_12, %c0_13] : memref<128x128xf32, #tpu.memory_space<vmem>>, vector<128x128xf32>
    %cst_14 = arith.constant dense<0.000000e+00> : vector<40x128xf32>
    %16 = tpu.matmul %14, %15, %cst_14 {dimension_numbers = #tpu.dot_dimension_numbers<[1], [0], [0], [1], [0, 0, 1, 1], [], []>} : vector<40x128xf32>, vector<128x128xf32>, vector<40x128xf32> -> vector<40x128xf32>
    %c0_15 = arith.constant 0 : index
    %c0_16 = arith.constant 0 : index
    %17 = vector.load %arg7[%c0_15, %c0_16] : memref<1x128xf32, #tpu.memory_space<vmem>>, vector<1x128xf32>
    %18 = vector.broadcast %17 : vector<1x128xf32> to vector<40x128xf32>
    %19 = arith.addf %16, %18 : vector<40x128xf32>
    %cst_17 = arith.constant 0.000000e+00 : f32
    %20 = vector.broadcast %cst_17 : f32 to vector<40x128xf32>
    %21 = arith.maximumf %19, %20 : vector<40x128xf32>
    %c0_18 = arith.constant 0 : index
    %c0_19 = arith.constant 0 : index
    %22 = vector.load %arg8[%c0_18, %c0_19] : memref<128x4xf32, #tpu.memory_space<vmem>>, vector<128x4xf32>
    %cst_20 = arith.constant dense<0.000000e+00> : vector<40x4xf32>
    %23 = tpu.matmul %21, %22, %cst_20 {dimension_numbers = #tpu.dot_dimension_numbers<[1], [0], [0], [1], [0, 0, 1, 1], [], []>} : vector<40x128xf32>, vector<128x4xf32>, vector<40x4xf32> -> vector<40x4xf32>
    %c0_21 = arith.constant 0 : index
    %c0_22 = arith.constant 0 : index
    %24 = vector.load %arg9[%c0_21, %c0_22] : memref<1x4xf32, #tpu.memory_space<vmem>>, vector<1x4xf32>
    %25 = vector.broadcast %24 : vector<1x4xf32> to vector<40x4xf32>
    %26 = arith.addf %23, %25 : vector<40x4xf32>
    %c0_23 = arith.constant 0 : index
    %c0_24 = arith.constant 0 : index
    %27 = vector.load %arg10[%c0_23, %c0_24] : memref<40x4xf32, #tpu.memory_space<vmem>>, vector<40x4xf32>
    tpu.vector_store %arg10[%c0_23, %c0_24], %26 {strides = array<i32>} : memref<40x4xf32, #tpu.memory_space<vmem>>, vector<40x4xf32>,
    return
  }
  func.func @transform_0(%arg0: i32) -> (i32, i32) {
    %c0_i32 = arith.constant 0 : i32
    %c0_i32_0 = arith.constant 0 : i32
    return %arg0, %c0_i32 : i32, i32
  }
  func.func @transform_1(%arg0: i32) -> (i32, i32) {
    %c0_i32 = arith.constant 0 : i32
    %c0_i32_0 = arith.constant 0 : i32
    %c0_i32_1 = arith.constant 0 : i32
    return %c0_i32, %c0_i32_0 : i32, i32
  }
  func.func @transform_2(%arg0: i32) -> (i32, i32) {
    %c0_i32 = arith.constant 0 : i32
    %c0_i32_0 = arith.constant 0 : i32
    %c0_i32_1 = arith.constant 0 : i32
    return %c0_i32, %c0_i32_0 : i32, i32
  }
  func.func @transform_3(%arg0: i32) -> (i32, i32) {
    %c0_i32 = arith.constant 0 : i32
    %c0_i32_0 = arith.constant 0 : i32
    %c0_i32_1 = arith.constant 0 : i32
    return %c0_i32, %c0_i32_0 : i32, i32
  }
  func.func @transform_4(%arg0: i32) -> (i32, i32) {
    %c0_i32 = arith.constant 0 : i32
    %c0_i32_0 = arith.constant 0 : i32
    %c0_i32_1 = arith.constant 0 : i32
    return %c0_i32, %c0_i32_0 : i32, i32
  }
  func.func @transform_5(%arg0: i32) -> (i32, i32) {
    %c0_i32 = arith.constant 0 : i32
    %c0_i32_0 = arith.constant 0 : i32
    %c0_i32_1 = arith.constant 0 : i32
    return %c0_i32, %c0_i32_0 : i32, i32
  }
  func.func @transform_6(%arg0: i32) -> (i32, i32) {
    %c0_i32 = arith.constant 0 : i32
    %c0_i32_0 = arith.constant 0 : i32
    %c0_i32_1 = arith.constant 0 : i32
    return %c0_i32, %c0_i32_0 : i32, i32
  }
  func.func @transform_7(%arg0: i32) -> (i32, i32) {
    %c0_i32 = arith.constant 0 : i32
    %c0_i32_0 = arith.constant 0 : i32
    %c0_i32_1 = arith.constant 0 : i32
    return %c0_i32, %c0_i32_0 : i32, i32
  }
  func.func @transform_8(%arg0: i32) -> (i32, i32) {
    %c0_i32 = arith.constant 0 : i32
    %c0_i32_0 = arith.constant 0 : i32
    %c0_i32_1 = arith.constant 0 : i32
    return %c0_i32, %c0_i32_0 : i32, i32
  }
  func.func @transform_9(%arg0: i32) -> (i32, i32) {
    %c0_i32 = arith.constant 0 : i32
    %c0_i32_0 = arith.constant 0 : i32
    return %arg0, %c0_i32 : i32, i32
  }
}

</mosaic_0001>

<llo_original>
// kernel: tpu_custom_call.1
$region0: #{tpu_custom_call.1}
  #allocation0 [shape = 'u32[]', space=smem, size = 0x4, offset = 0x4, fixed_abs, tag = 'smem constant byte address 0x4 - core index']
  #allocation1 [shape = 'u32[72,128]{1,0:T(1,128)}', space=vmem, size = 0x9000, scoped, tag = 'internal scratch']
  %s0 = inlined_call_operand.vmem [shape: f32[40,16], index: 0, kind: input, shape index: {}]
  %s1 = inlined_call_operand.vmem [shape: f32[16,128], index: 1, kind: input, shape index: {}]
  %s2 = inlined_call_operand.vmem [shape: f32[1,128], index: 2, kind: input, shape index: {}]
  %s3 = inlined_call_operand.vmem [shape: f32[128,128], index: 3, kind: input, shape index: {}]
  %s4 = inlined_call_operand.vmem [shape: f32[1,128], index: 4, kind: input, shape index: {}]
  %s5 = inlined_call_operand.hbm [shape: f32[128,128], index: 5, kind: input, shape index: {}]
  %s6 = inlined_call_operand.vmem [shape: f32[1,128], index: 6, kind: input, shape index: {}]
  %s7 = inlined_call_operand.vmem [shape: f32[128,4], index: 7, kind: input, shape index: {}]
  %s8 = inlined_call_operand.vmem [shape: f32[1,4], index: 8, kind: input, shape index: {}]
  %s9 = inlined_call_operand.vmem [shape: f32[40,4], index: 9, kind: output, shape index: {}]
  %s10 = sld [smem:[#allocation0]]
  $region50: #{tpu_custom_call.1} parent=0
    _
  %s12 = ssub.s32 1, %s10
  %s13 = scalar_select 0, %s12, %s10
  $region1: #{tpu_custom_call.1} parent=0
    #allocation2 [shape = 'u8[65536]{0}', space=vmem, size = 0x10000, scoped, tag = 'input window, operand 5, single buffered']
    #allocation3 [shape = 's32[1]{0}', space=sflag, size = 0x4, scoped, tag = 'scoped memory for tpu_custom_call.1']
    %14 = vsyncpa [#allocation3], 0
    // Predicated region
    $region2: #{tpu_custom_call.1} parent=1 // pred_check
      _
    $region3: #{tpu_custom_call.1} parent=1 // pred_check_branch
      %16 = sbr.rel (0) target = $region5
    $region4: #{tpu_custom_call.1} parent=1 // pred_region
      _
    $region5: #{tpu_custom_call.1} parent=1 // pred_fallthru
      _
    // Predicated region
    $region6: #{tpu_custom_call.1} parent=1 // pred_check
      _
    $region7: #{tpu_custom_call.1} parent=1 // pred_check_branch
      %18 = sbr.rel (0) target = $region9
    $region8: #{tpu_custom_call.1} parent=1 // pred_region
      _
    $region9: #{tpu_custom_call.1} parent=1 // pred_fallthru
      _
    // Predicated region
    $region10: #{tpu_custom_call.1} parent=1 // pred_check
      _
    $region11: #{tpu_custom_call.1} parent=1 // pred_check_branch
      %20 = sbr.rel (0) target = $region13
    $region12: #{tpu_custom_call.1} parent=1 // pred_region
      _
    $region13: #{tpu_custom_call.1} parent=1 // pred_fallthru
      _
    // Predicated region
    $region14: #{tpu_custom_call.1} parent=1 // pred_check
      _
    $region15: #{tpu_custom_call.1} parent=1 // pred_check_branch
      %22 = sbr.rel (0) target = $region17
    $region16: #{tpu_custom_call.1} parent=1 // pred_region
      _
    $region17: #{tpu_custom_call.1} parent=1 // pred_fallthru
      _
    // Predicated region
    $region18: #{tpu_custom_call.1} parent=1 // pred_check
      _
    $region19: #{tpu_custom_call.1} parent=1 // pred_check_branch
      %24 = sbr.rel (0) target = $region21
    $region20: #{tpu_custom_call.1} parent=1 // pred_region
      _
    $region21: #{tpu_custom_call.1} parent=1 // pred_fallthru
      _
    // Predicated region
    $region22: #{tpu_custom_call.1} parent=1 // pred_check
      _
    $region23: #{tpu_custom_call.1} parent=1 // pred_check_branch
      %26 = sbr.rel (0) target = $region25
    $region24: #{tpu_custom_call.1} parent=1 // pred_region
      %28 = vsyncadd [#allocation3], 0
      %s29 = sshll.u32 %s5, 4
      %s30 = int_to_ptr.hbm [resolvable:$true] %s29
      %s31 = sshll.u32 [#allocation2], 4
      %s32 = int_to_ptr.vmem [resolvable:$true] %s31
      %37 = dma.hbm_to_vmem [thread:$0]  %s30, 2048, %s32, [#allocation3], 128, 128, 8
    $region25: #{tpu_custom_call.1} parent=1 // pred_fallthru
      _
    // Predicated region
    $region26: #{tpu_custom_call.1} parent=1 // pred_check
      _
    $region27: #{tpu_custom_call.1} parent=1 // pred_check_branch
      %39 = sbr.rel (0) target = $region29
    $region28: #{tpu_custom_call.1} parent=1 // pred_region
      _
    $region29: #{tpu_custom_call.1} parent=1 // pred_fallthru
      _
    // Predicated region
    $region30: #{tpu_custom_call.1} parent=1 // pred_check
      _
    $region31: #{tpu_custom_call.1} parent=1 // pred_check_branch
      %41 = sbr.rel (0) target = $region33
    $region32: #{tpu_custom_call.1} parent=1 // pred_region
      _
    $region33: #{tpu_custom_call.1} parent=1 // pred_fallthru
      _
    // Predicated region
    $region34: #{tpu_custom_call.1} parent=1 // pred_check
      _
    $region35: #{tpu_custom_call.1} parent=1 // pred_check_branch
      %43 = sbr.rel (0) target = $region37
    $region36: #{tpu_custom_call.1} parent=1 // pred_region
      _
    $region37: #{tpu_custom_call.1} parent=1 // pred_fallthru
      _
    // Predicated region
    $region38: #{tpu_custom_call.1} parent=1 // pred_check
      _
    $region39: #{tpu_custom_call.1} parent=1 // pred_check_branch
      %45 = sbr.rel (0) target = $region41
    $region40: #{tpu_custom_call.1} parent=1 // pred_region
      %47 = dma.done [#allocation3], 2048
    $region41: #{tpu_custom_call.1} parent=1 // pred_fallthru
      _
    %v48 = vld [vmem:[%s0] sm:$0xff]
    %v49 = vld [vmem:[%s0 + $0x8] sm:$0xff]
    %v50 = vld [vmem:[%s0 + $0x10] sm:$0xff]
    %v51 = vld [vmem:[%s0 + $0x18] sm:$0xff]
    %v52 = vld [vmem:[%s0 + $0x20] sm:$0xff]
    %v53 = vld [vmem:[%s1] sm:$0xff]
    %v54 = vld [vmem:[%s1 + $0x8] sm:$0xff]
    %v55 = vld [vmem:[%s2] sm:$0x1]
    %v57 = vperm.slane %v55, 0
    %vm59 = vcmask 130048
    %v61 = vsel %vm59, %v48, 0
    %v64 = vsel %vm59, %v49, 0
    %v67 = vsel %vm59, %v50, 0
    %v70 = vsel %vm59, %v51, 0
    %v73 = vsel %vm59, %v52, 0
    %75 = vmatpush.msra.mxu0 0.0
    %76 = vmatpush.msra.mxu0 0.0
    %77 = vmatpush.msra.mxu0 0.0
    %78 = vmatpush.msra.mxu0 0.0
    %79 = vmatpush.msra.mxu0 0.0
    %80 = vmatpush.msra.mxu0 0.0
    %81 = vmatpush.msra.mxu0 0.0
    %82 = vmatpush.msra.mxu0 0.0
    %83 = vmatpush.msra.mxu0 0.0
    %84 = vmatpush.msra.mxu0 0.0
    %85 = vmatpush.msra.mxu0 0.0
    %86 = vmatpush.msra.mxu0 0.0
    %87 = vmatpush.msra.mxu0 0.0
    %88 = vmatpush.msra.mxu0 0.0
    %89 = vmatpush.msra.mxu0 %v54
    %90 = vmatpush.msra.mxu0 %v53
    %91 = vmatmul.f32.gmra.mxu0 %v61
    %v92 = vpop.f32.mrf.mxu0
    %v93 = vadd.f32 %v57, %v92
    %94 = vmatmul.f32.gmra.mxu0 %v64
    %v95 = vpop.f32.mrf.mxu0
    %v96 = vadd.f32 %v57, %v95
    %97 = vmatmul.f32.gmra.mxu0 %v67
    %v98 = vpop.f32.mrf.mxu0
    %v99 = vadd.f32 %v57, %v98
    %100 = vmatmul.f32.gmra.mxu0 %v70
    %v101 = vpop.f32.mrf.mxu0
    %v102 = vadd.f32 %v57, %v101
    %103 = vmatmul.f32.gmra.mxu0 %v73
    %v104 = vpop.f32.mrf.mxu0
    %v105 = vadd.f32 %v57, %v104
    %106 = vdwg.mxu0
    %v107 = vmax.f32 %v93, 0.0
    %v108 = vmax.f32 %v96, 0.0
    %v109 = vmax.f32 %v99, 0.0
    %v110 = vmax.f32 %v102, 0.0
    %v111 = vmax.f32 %v105, 0.0
    %v112 = vld [vmem:[%s3] sm:$0xff]
    %v113 = vld [vmem:[%s3 + $0x8] sm:$0xff]
    %v114 = vld [vmem:[%s3 + $0x10] sm:$0xff]
    %v115 = vld [vmem:[%s3 + $0x18] sm:$0xff]
    %v116 = vld [vmem:[%s3 + $0x20] sm:$0xff]
    %v117 = vld [vmem:[%s3 + $0x28] sm:$0xff]
    %v118 = vld [vmem:[%s3 + $0x30] sm:$0xff]
    %v119 = vld [vmem:[%s3 + $0x38] sm:$0xff]
    %v120 = vld [vmem:[%s3 + $0x40] sm:$0xff]
    %v121 = vld [vmem:[%s3 + $0x48] sm:$0xff]
    %v122 = vld [vmem:[%s3 + $0x50] sm:$0xff]
    %v123 = vld [vmem:[%s3 + $0x58] sm:$0xff]
    %v124 = vld [vmem:[%s3 + $0x60] sm:$0xff]
    %v125 = vld [vmem:[%s3 + $0x68] sm:$0xff]
    %v126 = vld [vmem:[%s3 + $0x70] sm:$0xff]
    %v127 = vld [vmem:[%s3 + $0x78] sm:$0xff]
    %v128 = vld [vmem:[%s4] sm:$0x1]
    %v130 = vperm.slane %v128, 0
    %132 = vmatpush.msra.mxu0 %v127
    %133 = vmatpush.msra.mxu0 %v126
    %134 = vmatpush.msra.mxu0 %v125
    %135 = vmatpush.msra.mxu0 %v124
    %136 = vmatpush.msra.mxu0 %v123
    %137 = vmatpush.msra.mxu0 %v122
    %138 = vmatpush.msra.mxu0 %v121
    %139 = vmatpush.msra.mxu0 %v120
    %140 = vmatpush.msra.mxu0 %v119
    %141 = vmatpush.msra.mxu0 %v118
    %142 = vmatpush.msra.mxu0 %v117
    %143 = vmatpush.msra.mxu0 %v116
    %144 = vmatpush.msra.mxu0 %v115
    %145 = vmatpush.msra.mxu0 %v114
    %146 = vmatpush.msra.mxu0 %v113
    %147 = vmatpush.msra.mxu0 %v112
    %148 = vmatmul.f32.gmra.mxu0 %v107
    %v149 = vpop.f32.mrf.mxu0
    %v150 = vadd.f32 %v130, %v149
    %151 = vmatmul.f32.gmra.mxu0 %v108
    %v152 = vpop.f32.mrf.mxu0
    %v153 = vadd.f32 %v130, %v152
    %154 = vmatmul.f32.gmra.mxu0 %v109
    %v155 = vpop.f32.mrf.mxu0
    %v156 = vadd.f32 %v130, %v155
    %157 = vmatmul.f32.gmra.mxu0 %v110
    %v158 = vpop.f32.mrf.mxu0
    %v159 = vadd.f32 %v130, %v158
    %160 = vmatmul.f32.gmra.mxu0 %v111
    %v161 = vpop.f32.mrf.mxu0
    %v162 = vadd.f32 %v130, %v161
    %163 = vdwg.mxu0
    %v164 = vmax.f32 %v150, 0.0
    %v165 = vmax.f32 %v153, 0.0
    %v166 = vmax.f32 %v156, 0.0
    %v167 = vmax.f32 %v159, 0.0
    %v168 = vmax.f32 %v162, 0.0
    %v169 = vld [vmem:[#allocation2] sm:$0xff]
    %v170 = vld [vmem:[#allocation2 + $0x8] sm:$0xff]
    %v171 = vld [vmem:[#allocation2 + $0x10] sm:$0xff]
    %v172 = vld [vmem:[#allocation2 + $0x18] sm:$0xff]
    %v173 = vld [vmem:[#allocation2 + $0x20] sm:$0xff]
    %v174 = vld [vmem:[#allocation2 + $0x28] sm:$0xff]
    %v175 = vld [vmem:[#allocation2 + $0x30] sm:$0xff]
    %v176 = vld [vmem:[#allocation2 + $0x38] sm:$0xff]
    %v177 = vld [vmem:[#allocation2 + $0x40] sm:$0xff]
    %v178 = vld [vmem:[#allocation2 + $0x48] sm:$0xff]
    %v179 = vld [vmem:[#allocation2 + $0x50] sm:$0xff]
    %v180 = vld [vmem:[#allocation2 + $0x58] sm:$0xff]
    %v181 = vld [vmem:[#allocation2 + $0x60] sm:$0xff]
    %v182 = vld [vmem:[#allocation2 + $0x68] sm:$0xff]
    %v183 = vld [vmem:[#allocation2 + $0x70] sm:$0xff]
    %v184 = vld [vmem:[#allocation2 + $0x78] sm:$0xff]
    %v185 = vld [vmem:[%s6] sm:$0x1]
    %v187 = vperm.slane %v185, 0
    %189 = vmatpush.msra.mxu0 %v184
    %190 = vmatpush.msra.mxu0 %v183
    %191 = vmatpush.msra.mxu0 %v182
    %192 = vmatpush.msra.mxu0 %v181
    %193 = vmatpush.msra.mxu0 %v180
    %194 = vmatpush.msra.mxu0 %v179
    %195 = vmatpush.msra.mxu0 %v178
    %196 = vmatpush.msra.mxu0 %v177
    %197 = vmatpush.msra.mxu0 %v176
    %198 = vmatpush.msra.mxu0 %v175
    %199 = vmatpush.msra.mxu0 %v174
    %200 = vmatpush.msra.mxu0 %v173
    %201 = vmatpush.msra.mxu0 %v172
    %202 = vmatpush.msra.mxu0 %v171
    %203 = vmatpush.msra.mxu0 %v170
    %204 = vmatpush.msra.mxu0 %v169
    %205 = vmatmul.f32.gmra.mxu0 %v164
    %v206 = vpop.f32.mrf.mxu0
    %v207 = vadd.f32 %v187, %v206
    %208 = vmatmul.f32.gmra.mxu0 %v165
    %v209 = vpop.f32.mrf.mxu0
    %v210 = vadd.f32 %v187, %v209
    %211 = vmatmul.f32.gmra.mxu0 %v166
    %v212 = vpop.f32.mrf.mxu0
    %v213 = vadd.f32 %v187, %v212
    %214 = vmatmul.f32.gmra.mxu0 %v167
    %v215 = vpop.f32.mrf.mxu0
    %v216 = vadd.f32 %v187, %v215
    %217 = vmatmul.f32.gmra.mxu0 %v168
    %v218 = vpop.f32.mrf.mxu0
    %v219 = vadd.f32 %v187, %v218
    %220 = vdwg.mxu0
    %v221 = vmax.f32 %v207, 0.0
    %v222 = vmax.f32 %v210, 0.0
    %v223 = vmax.f32 %v213, 0.0
    %v224 = vmax.f32 %v216, 0.0
    %v225 = vmax.f32 %v219, 0.0
    %v226 = vld [vmem:[%s7] sm:$0xff]
    %v227 = vld [vmem:[%s7 + $0x8] sm:$0xff]
    %v228 = vld [vmem:[%s7 + $0x10] sm:$0xff]
    %v229 = vld [vmem:[%s7 + $0x18] sm:$0xff]
    %v230 = vld [vmem:[%s7 + $0x20] sm:$0xff]
    %v231 = vld [vmem:[%s7 + $0x28] sm:$0xff]
    %v232 = vld [vmem:[%s7 + $0x30] sm:$0xff]
    %v233 = vld [vmem:[%s7 + $0x38] sm:$0xff]
    %v234 = vld [vmem:[%s7 + $0x40] sm:$0xff]
    %v235 = vld [vmem:[%s7 + $0x48] sm:$0xff]
    %v236 = vld [vmem:[%s7 + $0x50] sm:$0xff]
    %v237 = vld [vmem:[%s7 + $0x58] sm:$0xff]
    %v238 = vld [vmem:[%s7 + $0x60] sm:$0xff]
    %v239 = vld [vmem:[%s7 + $0x68] sm:$0xff]
    %v240 = vld [vmem:[%s7 + $0x70] sm:$0xff]
    %v241 = vld [vmem:[%s7 + $0x78] sm:$0xff]
    %v242 = vld [vmem:[%s8] sm:$0x1]
    %v244 = vperm.slane %v242, 0
    %246 = vmatpush.msra.mxu0 %v241
    %247 = vmatpush.msra.mxu0 %v240
    %248 = vmatpush.msra.mxu0 %v239
    %249 = vmatpush.msra.mxu0 %v238
    %250 = vmatpush.msra.mxu0 %v237
    %251 = vmatpush.msra.mxu0 %v236
    %252 = vmatpush.msra.mxu0 %v235
    %253 = vmatpush.msra.mxu0 %v234
    %254 = vmatpush.msra.mxu0 %v233
    %255 = vmatpush.msra.mxu0 %v232
    %256 = vmatpush.msra.mxu0 %v231
    %257 = vmatpush.msra.mxu0 %v230
    %258 = vmatpush.msra.mxu0 %v229
    %259 = vmatpush.msra.mxu0 %v228
    %260 = vmatpush.msra.mxu0 %v227
    %261 = vmatpush.msra.mxu0 %v226
    %262 = vmatmul.f32.gmra.mxu0 %v221
    %v263 = vpop.f32.mrf.mxu0
    %v264 = vadd.f32 %v244, %v263
    %265 = vmatmul.f32.gmra.mxu0 %v222
    %v266 = vpop.f32.mrf.mxu0
    %v267 = vadd.f32 %v244, %v266
    %268 = vmatmul.f32.gmra.mxu0 %v223
    %v269 = vpop.f32.mrf.mxu0
    %v270 = vadd.f32 %v244, %v269
    %271 = vmatmul.f32.gmra.mxu0 %v224
    %v272 = vpop.f32.mrf.mxu0
    %v273 = vadd.f32 %v244, %v272
    %274 = vmatmul.f32.gmra.mxu0 %v225
    %v275 = vpop.f32.mrf.mxu0
    %v276 = vadd.f32 %v244, %v275
    %277 = vdwg.mxu0
    %vm278 = vcmask 31744
    %279 = vst.msk [vmem:[%s9] sm:$0xff] %vm278, %v264
    %280 = vst.msk [vmem:[%s9 + $0x8] sm:$0xff] %vm278, %v267
    %281 = vst.msk [vmem:[%s9 + $0x10] sm:$0xff] %vm278, %v270
    %282 = vst.msk [vmem:[%s9 + $0x18] sm:$0xff] %vm278, %v273
    %283 = vst.msk [vmem:[%s9 + $0x20] sm:$0xff] %vm278, %v276
    // Predicated region
    $region42: #{tpu_custom_call.1} parent=1 // pred_check
      _
    $region43: #{tpu_custom_call.1} parent=1 // pred_check_branch
      %285 = sbr.rel (0) target = $region45
    $region44: #{tpu_custom_call.1} parent=1 // pred_region
      _
    $region45: #{tpu_custom_call.1} parent=1 // pred_fallthru
      _
    // Predicated region
    $region46: #{tpu_custom_call.1} parent=1 // pred_check
      _
    $region47: #{tpu_custom_call.1} parent=1 // pred_check_branch
      %287 = sbr.rel (0) target = $region49
    $region48: #{tpu_custom_call.1} parent=1 // pred_region
      _
    $region49: #{tpu_custom_call.1} parent=1 // pred_fallthru
      _
    %288 = vsyncpa [#allocation3], 1

</llo_original>
